<compile_context>
chip_gen: v5e
topology: v5e:2x2
jax: 0.10.0
libtpu: 0.0.40
codegen_flags: <defaults>
</compile_context>

<pallas_src>
import functools

import numpy as np
import jax
import jax.numpy as jnp
from jax.experimental import pallas as pl
from jax.experimental.pallas import tpu as pltpu


# --------------------------------------------------------------------------
# Fused kernel: GT masked NLL + all MC masked NLLs in one pass over logp
# --------------------------------------------------------------------------
def _fused_nll_kernel(logp_ref, tgt_ref, mask_ref, out_ref, acc_ref, *,
                      num_samples, penalize):
    step = pl.program_id(1)                       # reduction axis (row tiles)

    @pl.when(step == 0)
    def _():
        acc_ref[...] = jnp.zeros_like(acc_ref)

    logp = logp_ref[...].astype(jnp.float32)      # (tile, V) — cast in VMEM
    mask = mask_ref[...]                          # (tile, 1) f32
    col = jax.lax.broadcasted_iota(jnp.int32, logp.shape, 1)

    # Hoisted entropy term: depends only on logp, reused for every MC sample.
    if penalize and num_samples > 1:
        neg_ent = jnp.sum(jnp.exp(logp) * logp, axis=-1, keepdims=True)

    # Per-sample masked-NLL partial sums, kept per-sublane (cross-sublane
    # reduction deferred to the final grid step).
    for s in range(num_samples):
        tgt_s = tgt_ref[:, s:s + 1]               # (tile, 1) i32, static slice
        gathered = jnp.sum(jnp.where(col == tgt_s, logp, 0.0),
                           axis=-1, keepdims=True)          # (tile, 1)
        per_tok = -gathered
        if penalize and s > 0:                    # penalty on MC samples only
            per_tok = per_tok + penalize * neg_ent
        acc_ref[:, s:s + 1] += per_tok * mask

    # Denominator column: sum of the mask.
    acc_ref[:, num_samples:num_samples + 1] += mask

    @pl.when(step == pl.num_programs(1) - 1)
    def _():
        out_ref[...] = jnp.sum(acc_ref[...], axis=0, keepdims=True)[None]


def _auto_tile_cap(V, itemsize, budget_bytes=16 * 1024 * 1024):
    """Largest row tile (multiple of 8, <= 512) whose logp block fits budget.

    16 MiB per buffer keeps the double-buffered logp working set <= 32 MiB,
    which fits the scoped VMEM of every generation (v7x: 64 MiB physical).
    """
    t = (budget_bytes // max(V * itemsize, 1)) // 8 * 8
    return int(max(8, min(512, t)))


def _choose_tile(BT, V, itemsize, requested=None):
    """Pick a row tile; prefer a divisor of BT to avoid a padded HBM copy."""
    if requested is None:
        cap = _auto_tile_cap(V, itemsize)
    else:
        cap = max(8, (int(requested) // 8) * 8)
    cap = max(8, min(cap, ((BT + 7) // 8) * 8))
    if BT % 8 == 0:
        best = 0
        for t in range(cap, 7, -8):
            if BT % t == 0:
                best = t
                break
        # A divisor >= cap/2 beats materializing a padded copy of logp in HBM.
        if best >= max(8, cap // 2):
            return best
    return cap


def fused_masked_nll(logp2, tgt2, mask2, *, penalize=0.0, tile=None):
    """logp2: (BT, V) float/bf16, tgt2: (BT, S) i32, mask2: (BT, 1) f32.

    Returns (S+1,) f32: per-sample masked-NLL numerators followed by the mask
    sum (shared denominator).  Sample 0 is the ground-truth column.
    """
    BT, V = logp2.shape
    S = tgt2.shape[1]

    tile = _choose_tile(BT, V, jnp.dtype(logp2.dtype).itemsize, tile)

    # Pad rows to a multiple of the tile (only when no good divisor exists);
    # padded rows carry mask == 0 so they contribute nothing.
    BT_pad = ((BT + tile - 1) // tile) * tile
    if BT_pad != BT:
        pad = BT_pad - BT
        logp2 = jnp.pad(logp2, ((0, pad), (0, 0)))
        tgt2 = jnp.pad(tgt2, ((0, pad), (0, 0)))
        mask2 = jnp.pad(mask2, ((0, pad), (0, 0)))

    steps = BT_pad // tile
    # Leading "parallel" split so v7x's two TensorCores each reduce half the
    # rows; on v5e/v6e this just runs sequentially.
    nsplit = 2 if (steps >= 2 and steps % 2 == 0) else 1
    steps_per_split = steps // nsplit

    kernel = functools.partial(_fused_nll_kernel, num_samples=S,
                               penalize=float(penalize))

    out = pl.pallas_call(
        kernel,
        out_shape=jax.ShapeDtypeStruct((nsplit, 1, S + 1), jnp.float32),
        grid_spec=pltpu.PrefetchScalarGridSpec(
            num_scalar_prefetch=0,
            grid=(nsplit, steps_per_split),
            in_specs=[
                pl.BlockSpec((tile, V),
                             lambda p, i: (p * steps_per_split + i, 0)),
                pl.BlockSpec((tile, S),
                             lambda p, i: (p * steps_per_split + i, 0)),
                pl.BlockSpec((tile, 1),
                             lambda p, i: (p * steps_per_split + i, 0)),
            ],
            out_specs=pl.BlockSpec((1, 1, S + 1), lambda p, i: (p, 0, 0)),
            scratch_shapes=[pltpu.VMEM((tile, S + 1), jnp.float32)],
        ),
        compiler_params=pltpu.CompilerParams(
            dimension_semantics=("parallel", "arbitrary"),
            vmem_limit_bytes=48 * 1024 * 1024),
    )(logp2, tgt2, mask2)

    return jnp.sum(out.reshape(nsplit, S + 1), axis=0)        # (S+1,)


# --------------------------------------------------------------------------
# Stand-in for sampler.nmt_sample: uniform token substitution with prob p.
# (Plain JAX — the external reward sampler is not reproducible here; its
#  (MC, B*T) int32 output is negligible HBM next to logp.)
# --------------------------------------------------------------------------
def draw_sampled_targets(rng_key, target, vocab, sub_prob, mc_samples):
    ku, kr = jax.random.split(rng_key)
    u = jax.random.uniform(ku, (mc_samples,) + target.shape)
    repl = jax.random.randint(kr, (mc_samples,) + target.shape, 0, vocab,
                              dtype=jnp.int32)
    return jnp.where(u < sub_prob, repl, target[None])        # (MC, B, T)


# --------------------------------------------------------------------------
# RewardSampler.forward (lazy_rnn path)
# --------------------------------------------------------------------------
def reward_sampler_forward(logp, output_lines_trg, mask, *, mc_samples=1,
                           penalize_confidence=0.0, sub_prob=0.25,
                           scores=None, rng_key=None, tile=None):
    """Returns (loss_gt, output, stats) like RewardSampler.forward."""
    B, T, V = logp.shape
    target = output_lines_trg[:, :T].astype(jnp.int32)
    mask = mask[:, :T].astype(jnp.float32)
    if scores is not None:
        # scores.repeat(1, seq_length) * mask  (scores: (B, 1))
        mask = mask * scores

    if rng_key is None:
        rng_key = jax.random.PRNGKey(0)
    sampled = draw_sampled_targets(rng_key, target, V, sub_prob, mc_samples)

    # Columns: [GT, MC_0, ..., MC_{mc-1}]  -> (BT, S)
    all_tgts = jnp.concatenate([target[None], sampled], axis=0)    # (S, B, T)
    S = mc_samples + 1
    tgt2 = all_tgts.reshape(S, B * T).T                            # (BT, S)
    logp2 = logp.reshape(B * T, V)            # keep dtype; kernel casts in VMEM
    mask2 = mask.reshape(B * T, 1)

    sums = fused_masked_nll(logp2, tgt2, mask2,
                            penalize=penalize_confidence, tile=tile)
    den = jnp.maximum(sums[S], 1e-9)              # guard sum(mask) == 0
    nums = sums[:S]

    loss_gt = nums[0] / den                        # batch_loss_lazy on GT
    output = jnp.mean(nums[1:]) / den              # mean over MC samples
    stats = {}
    return loss_gt, output, stats


if __name__ == "__main__":
    B, T, V = 4, 8, 32
    mc_samples = 2
    penalize = 0.1
    sub_prob = 0.3

    key = jax.random.PRNGKey(0)
    k1, k2, k3 = jax.random.split(key, 3)

    # decoder log-probabilities (output of model.forward_decoder)
    logits = jax.random.normal(k1, (B, T, V), dtype=jnp.float32)
    logp = jax.nn.log_softmax(logits, axis=-1)

    output_trg = jax.random.randint(k2, (B, T), 0, V, dtype=jnp.int32)
    lengths = jnp.array([8, 6, 7, 5], dtype=jnp.int32)
    mask = (jnp.arange(T)[None, :] < lengths[:, None]).astype(jnp.float32)

    fwd = jax.jit(functools.partial(
        reward_sampler_forward, mc_samples=mc_samples,
        penalize_confidence=penalize, sub_prob=sub_prob, tile=8))
    loss_gt, output, stats = fwd(logp, output_trg, mask, rng_key=k3)
    loss_gt = jax.block_until_ready(loss_gt)
    output = jax.block_until_ready(output)

    # ---------------- plain-JAX reference ----------------
    def ref_masked_nll(tgt, pen):
        g = jnp.take_along_axis(logp, tgt[..., None], axis=-1)[..., 0]
        per_tok = -g
        if pen:
            neg_ent = jnp.sum(jnp.exp(logp) * logp, axis=-1)
            per_tok = per_tok + pen * neg_ent
        return jnp.sum(per_tok * mask) / jnp.sum(mask)

    sampled_ref = draw_sampled_targets(k3, output_trg, V, sub_prob, mc_samples)
    ref_gt = ref_masked_nll(output_trg, 0.0)
    ref_out = jnp.mean(jnp.stack(
        [ref_masked_nll(sampled_ref[s], penalize) for s in range(mc_samples)]))

    assert np.allclose(np.asarray(loss_gt), np.asarray(ref_gt),
                       rtol=1e-5, atol=1e-5), (loss_gt, ref_gt)
    assert np.allclose(np.asarray(output), np.asarray(ref_out),
                       rtol=1e-5, atol=1e-5), (output, ref_out)
    assert np.isfinite(np.asarray(output)) and np.isfinite(np.asarray(loss_gt))

    print("KERNEL_OK")
</pallas_src>

<mosaic_0001>
module attributes {stable_mosaic.version = 11 : i64} {
  func.func @_fused_nll_kernel(%arg0: i32, %arg1: i32, %arg2: memref<8x32xf32, #tpu.memory_space<vmem>>, %arg3: memref<8x3xi32, #tpu.memory_space<vmem>>, %arg4: memref<8x1xf32, #tpu.memory_space<vmem>>, %arg5: memref<1x1x4xf32, #tpu.memory_space<vmem>>, %arg6: memref<8x4xf32, #tpu.memory_space<vmem>>) attributes {dimension_semantics = [#tpu.dimension_semantics<parallel>, #tpu.dimension_semantics<arbitrary>], iteration_bounds = array<i64: 2, 2>, scalar_prefetch = 0 : i64, scratch_operands = 1 : i64, tpu.core_type = #tpu.core_type<tc>, window_params = [{transform_indices = @transform_0, window_bounds = array<i64: 8, 32>}, {transform_indices = @transform_1, window_bounds = array<i64: 8, 3>}, {transform_indices = @transform_2, window_bounds = array<i64: 8, 1>}, {transform_indices = @transform_3, window_bounds = array<i64: 1, 1, 4>}]} {
    %c0_i32 = arith.constant 0 : i32
    %0 = arith.cmpi eq, %arg1, %c0_i32 : i32
    %1 = arith.extui %0 : i1 to i32
    %c0_i32_0 = arith.constant 0 : i32
    %2 = arith.cmpi ne, %1, %c0_i32_0 : i32
    scf.if %2 {
      %cst_35 = arith.constant 0.000000e+00 : f32
      %61 = vector.broadcast %cst_35 : f32 to vector<8x4xf32>
      %c0_36 = arith.constant 0 : index
      %c0_37 = arith.constant 0 : index
      %62 = vector.load %arg6[%c0_36, %c0_37] : memref<8x4xf32, #tpu.memory_space<vmem>>, vector<8x4xf32>
      tpu.vector_store %arg6[%c0_36, %c0_37], %61 {strides = array<i32>} : memref<8x4xf32, #tpu.memory_space<vmem>>, vector<8x4xf32>,
    } else {
    }
    %c0 = arith.constant 0 : index
    %c0_1 = arith.constant 0 : index
    %3 = vector.load %arg2[%c0, %c0_1] : memref<8x32xf32, #tpu.memory_space<vmem>>, vector<8x32xf32>
    %c0_2 = arith.constant 0 : index
    %c0_3 = arith.constant 0 : index
    %4 = vector.load %arg4[%c0_2, %c0_3] : memref<8x1xf32, #tpu.memory_space<vmem>>, vector<8x1xf32>
    %5 = tpu.iota {dimensions = array<i32: 1>} : vector<8x32xi32>
    %6 = math.exp %3 : vector<8x32xf32>
    %7 = arith.mulf %6, %3 : vector<8x32xf32>
    %cst = arith.constant dense<0.000000e+00> : vector<8xf32>
    %8 = vector.multi_reduction <add>, %7, %cst [1] : vector<8x32xf32> to vector<8xf32>
    %9 = vector.shape_cast %8 : vector<8xf32> to vector<8x1xf32>
    %c0_4 = arith.constant 0 : index
    %c0_5 = arith.constant 0 : index
    %10 = vector.load %arg3[%c0_4, %c0_5] : memref<8x3xi32, #tpu.memory_space<vmem>>, vector<8x1xi32>
    %11 = vector.broadcast %10 : vector<8x1xi32> to vector<8x32xi32>
    %12 = arith.cmpi eq, %5, %11 : vector<8x32xi32>
    %cst_6 = arith.constant 0.000000e+00 : f32
    %13 = vector.broadcast %cst_6 : f32 to vector<8x32xf32>
    %14 = arith.select %12, %3, %13 : vector<8x32xi1>, vector<8x32xf32>
    %cst_7 = arith.constant dense<0.000000e+00> : vector<8xf32>
    %15 = vector.multi_reduction <add>, %14, %cst_7 [1] : vector<8x32xf32> to vector<8xf32>
    %16 = vector.shape_cast %15 : vector<8xf32> to vector<8x1xf32>
    %cst_8 = arith.constant 0.000000e+00 : f32
    %17 = vector.broadcast %cst_8 : f32 to vector<8x1xf32>
    %18 = arith.subf %17, %16 : vector<8x1xf32>
    %c0_9 = arith.constant 0 : index
    %c0_10 = arith.constant 0 : index
    %19 = vector.load %arg6[%c0_9, %c0_10] : memref<8x4xf32, #tpu.memory_space<vmem>>, vector<8x1xf32>
    %20 = arith.mulf %18, %4 : vector<8x1xf32>
    %21 = arith.addf %19, %20 : vector<8x1xf32>
    %c0_11 = arith.constant 0 : index
    %c0_12 = arith.constant 0 : index
    %22 = vector.load %arg6[%c0_11, %c0_12] : memref<8x4xf32, #tpu.memory_space<vmem>>, vector<8x1xf32>
    tpu.vector_store %arg6[%c0_11, %c0_12], %21 {strides = array<i32>} : memref<8x4xf32, #tpu.memory_space<vmem>>, vector<8x1xf32>,
    %c0_13 = arith.constant 0 : index
    %c1 = arith.constant 1 : index
    %23 = vector.load %arg3[%c0_13, %c1] : memref<8x3xi32, #tpu.memory_space<vmem>>, vector<8x1xi32>
    %24 = vector.broadcast %23 : vector<8x1xi32> to vector<8x32xi32>
    %25 = arith.cmpi eq, %5, %24 : vector<8x32xi32>
    %cst_14 = arith.constant 0.000000e+00 : f32
    %26 = vector.broadcast %cst_14 : f32 to vector<8x32xf32>
    %27 = arith.select %25, %3, %26 : vector<8x32xi1>, vector<8x32xf32>
    %cst_15 = arith.constant dense<0.000000e+00> : vector<8xf32>
    %28 = vector.multi_reduction <add>, %27, %cst_15 [1] : vector<8x32xf32> to vector<8xf32>
    %29 = vector.shape_cast %28 : vector<8xf32> to vector<8x1xf32>
    %cst_16 = arith.constant 0.000000e+00 : f32
    %30 = vector.broadcast %cst_16 : f32 to vector<8x1xf32>
    %31 = arith.subf %30, %29 : vector<8x1xf32>
    %cst_17 = arith.constant 1.000000e-01 : f32
    %32 = vector.broadcast %cst_17 : f32 to vector<8x1xf32>
    %33 = arith.mulf %32, %9 : vector<8x1xf32>
    %34 = arith.addf %31, %33 : vector<8x1xf32>
    %c0_18 = arith.constant 0 : index
    %c1_19 = arith.constant 1 : index
    %35 = vector.load %arg6[%c0_18, %c1_19] : memref<8x4xf32, #tpu.memory_space<vmem>>, vector<8x1xf32>
    %36 = arith.mulf %34, %4 : vector<8x1xf32>
    %37 = arith.addf %35, %36 : vector<8x1xf32>
    %c0_20 = arith.constant 0 : index
    %c1_21 = arith.constant 1 : index
    %38 = vector.load %arg6[%c0_20, %c1_21] : memref<8x4xf32, #tpu.memory_space<vmem>>, vector<8x1xf32>
    tpu.vector_store %arg6[%c0_20, %c1_21], %37 {strides = array<i32>} : memref<8x4xf32, #tpu.memory_space<vmem>>, vector<8x1xf32>,
    %c0_22 = arith.constant 0 : index
    %c2 = arith.constant 2 : index
    %39 = vector.load %arg3[%c0_22, %c2] : memref<8x3xi32, #tpu.memory_space<vmem>>, vector<8x1xi32>
    %40 = vector.broadcast %39 : vector<8x1xi32> to vector<8x32xi32>
    %41 = arith.cmpi eq, %5, %40 : vector<8x32xi32>
    %cst_23 = arith.constant 0.000000e+00 : f32
    %42 = vector.broadcast %cst_23 : f32 to vector<8x32xf32>
    %43 = arith.select %41, %3, %42 : vector<8x32xi1>, vector<8x32xf32>
    %cst_24 = arith.constant dense<0.000000e+00> : vector<8xf32>
    %44 = vector.multi_reduction <add>, %43, %cst_24 [1] : vector<8x32xf32> to vector<8xf32>
    %45 = vector.shape_cast %44 : vector<8xf32> to vector<8x1xf32>
    %cst_25 = arith.constant 0.000000e+00 : f32
    %46 = vector.broadcast %cst_25 : f32 to vector<8x1xf32>
    %47 = arith.subf %46, %45 : vector<8x1xf32>
    %cst_26 = arith.constant 1.000000e-01 : f32
    %48 = vector.broadcast %cst_26 : f32 to vector<8x1xf32>
    %49 = arith.mulf %48, %9 : vector<8x1xf32>
    %50 = arith.addf %47, %49 : vector<8x1xf32>
    %c0_27 = arith.constant 0 : index
    %c2_28 = arith.constant 2 : index
    %51 = vector.load %arg6[%c0_27, %c2_28] : memref<8x4xf32, #tpu.memory_space<vmem>>, vector<8x1xf32>
    %52 = arith.mulf %50, %4 : vector<8x1xf32>
    %53 = arith.addf %51, %52 : vector<8x1xf32>
    %c0_29 = arith.constant 0 : index
    %c2_30 = arith.constant 2 : index
    %54 = vector.load %arg6[%c0_29, %c2_30] : memref<8x4xf32, #tpu.memory_space<vmem>>, vector<8x1xf32>
    tpu.vector_store %arg6[%c0_29, %c2_30], %53 {strides = array<i32>} : memref<8x4xf32, #tpu.memory_space<vmem>>, vector<8x1xf32>,
    %c0_31 = arith.constant 0 : index
    %c3 = arith.constant 3 : index
    %55 = vector.load %arg6[%c0_31, %c3] : memref<8x4xf32, #tpu.memory_space<vmem>>, vector<8x1xf32>
    %56 = arith.addf %55, %4 : vector<8x1xf32>
    %c0_32 = arith.constant 0 : index
    %c3_33 = arith.constant 3 : index
    %57 = vector.load %arg6[%c0_32, %c3_33] : memref<8x4xf32, #tpu.memory_space<vmem>>, vector<8x1xf32>
    tpu.vector_store %arg6[%c0_32, %c3_33], %56 {strides = array<i32>} : memref<8x4xf32, #tpu.memory_space<vmem>>, vector<8x1xf32>,
    %c1_i32 = arith.constant 1 : i32
    %58 = arith.cmpi eq, %arg1, %c1_i32 : i32
    %59 = arith.extui %58 : i1 to i32
    %c0_i32_34 = arith.constant 0 : i32
    %60 = arith.cmpi ne, %59, %c0_i32_34 : i32
    scf.if %60 {
      %c0_35 = arith.constant 0 : index
      %c0_36 = arith.constant 0 : index
      %61 = vector.load %arg6[%c0_35, %c0_36] : memref<8x4xf32, #tpu.memory_space<vmem>>, vector<8x4xf32>
      %cst_37 = arith.constant dense<0.000000e+00> : vector<4xf32>
      %62 = vector.multi_reduction <add>, %61, %cst_37 [0] : vector<8x4xf32> to vector<4xf32>
      %63 = vector.shape_cast %62 : vector<4xf32> to vector<1x4xf32>
      %64 = vector.shape_cast %63 : vector<1x4xf32> to vector<1x1x4xf32>
      %c0_38 = arith.constant 0 : index
      %c0_39 = arith.constant 0 : index
      %c0_40 = arith.constant 0 : index
      %65 = vector.load %arg5[%c0_38, %c0_39, %c0_40] : memref<1x1x4xf32, #tpu.memory_space<vmem>>, vector<1x1x4xf32>
      tpu.vector_store %arg5[%c0_38, %c0_39, %c0_40], %64 {strides = array<i32>} : memref<1x1x4xf32, #tpu.memory_space<vmem>>, vector<1x1x4xf32>,
    } else {
    }
    return
  }
  func.func @transform_0(%arg0: i32, %arg1: i32) -> (i32, i32) {
    %c2_i32 = arith.constant 2 : i32
    %0 = arith.muli %arg0, %c2_i32 : i32
    %1 = arith.addi %0, %arg1 : i32
    %c0_i32 = arith.constant 0 : i32
    %c0_i32_0 = arith.constant 0 : i32
    return %1, %c0_i32 : i32, i32
  }
  func.func @transform_1(%arg0: i32, %arg1: i32) -> (i32, i32) {
    %c2_i32 = arith.constant 2 : i32
    %0 = arith.muli %arg0, %c2_i32 : i32
    %1 = arith.addi %0, %arg1 : i32
    %c0_i32 = arith.constant 0 : i32
    %c0_i32_0 = arith.constant 0 : i32
    return %1, %c0_i32 : i32, i32
  }
  func.func @transform_2(%arg0: i32, %arg1: i32) -> (i32, i32) {
    %c2_i32 = arith.constant 2 : i32
    %0 = arith.muli %arg0, %c2_i32 : i32
    %1 = arith.addi %0, %arg1 : i32
    %c0_i32 = arith.constant 0 : i32
    %c0_i32_0 = arith.constant 0 : i32
    return %1, %c0_i32 : i32, i32
  }
  func.func @transform_3(%arg0: i32, %arg1: i32) -> (i32, i32, i32) {
    %c0_i32 = arith.constant 0 : i32
    %c0_i32_0 = arith.constant 0 : i32
    %c0_i32_1 = arith.constant 0 : i32
    return %arg0, %c0_i32, %c0_i32_0 : i32, i32, i32
  }
}

</mosaic_0001>

<llo_original>
// kernel: reward_sampler_forward.1
$region0: #{reward_sampler_forward.1}
  #allocation0 [shape = 'u32[]', space=smem, size = 0x4, offset = 0x4, fixed_abs, tag = 'smem constant byte address 0x4 - core index']
  #allocation1 [shape = 'u32[72,128]{1,0:T(1,128)}', space=vmem, size = 0x9000, scoped, tag = 'internal scratch']
  #allocation2 [shape = 'f32[8,4]{1,0:T(8,128)}', space=vmem, size = 0x1000, scoped, tag = 'scratch operand']
  %s0 = inlined_call_operand.vmem [shape: f32[32,32], index: 0, kind: input, shape index: {}]
  %s1 = inlined_call_operand.vmem [shape: s32[32,3], index: 1, kind: input, shape index: {}]
  %s2 = inlined_call_operand.vmem [shape: f32[32,1], index: 2, kind: input, shape index: {}]
  %s3 = inlined_call_operand.vmem [shape: f32[2,1,4], index: 3, kind: output, shape index: {}]
  %s4 = sld [smem:[#allocation0]]
  $region53: #{reward_sampler_forward.1} parent=0
    _
  %s6 = ssub.s32 1, %s4
  %s7 = scalar_select 0, %s6, %s4
  loop: start=0, step=1, limit=6
  $region2: #{reward_sampler_forward.1} parent=0 // loop_pre_header
    _
  $region3: #{reward_sampler_forward.1} parent=0 // loop_header
    %s9 = sphi 0, %s13
    %p10 = scmp.ge.s32.totalorder %s9, 6
    %s16 = sphi 0, %s28
    %s17 = sphi 0, %s24
    %s18 = sphi 0, %s16
    %s19 = sphi 0, %s17
    %s20 = sphi 0, %s18
    %s21 = sphi 0, %s19
    %s35 = sphi 0, %s37
    %s38 = sphi 0, %s35
    %s39 = sphi 0, %s38
    %s55 = sphi 0, %s39
    %s65 = sphi 0, %s67
    %s68 = sphi 0, %s65
    %s69 = sphi 0, %s68
    %s85 = sphi 0, %s69
    %s95 = sphi 0, %s97
    %s98 = sphi 0, %s95
    %s99 = sphi 0, %s98
    %s115 = sphi 0, %s99
    %s121 = sphi 0, %s123
    %s124 = sphi 0, %s121
    %s125 = sphi 0, %s124
    %s141 = sphi 0, %s125
  $region4: #{reward_sampler_forward.1} parent=0 // loop_header_branch
    %12 = sbr.rel (%p10) target = $region8
  $region5: #{reward_sampler_forward.1} parent=0 // loop_body
    %s14 = ssub.s32 %s9, 1
    %s15 = ssub.s32 %s9, 2
    %s22 = sadd.s32 1, %s17
    %p23 = scmp.ge.s32.totalorder %s22, 2
    %s24 = scalar_select %p23, 0, %s22
    %s25 = sadd.s32 1, %s16
    %s26 = scalar_select %p23, %s25, %s16
    %p27 = scmp.ge.s32.totalorder %s26, 2
    %s28 = scalar_select %p27, 0, %s26
    %s29 = smul.u32 %s16, 2
    %s30 = sadd.s32 %s29, %s17
    %s31 = smul.u32 %s28, 2
    %s32 = sadd.s32 %s31, %s24
    %s33 = ssub.s32 %s30, %s32
    %p34 = scmp.eq.s32.totalorder %s33, 0
    %s36 = sadd.s32 %s35, 1
    %s37 = scalar_select %p34, %s35, %s36
    %p40 = pneg %p34
    %p41 = scmp.eq.s32.totalorder %s9, 3
    %p42 = por %p40, %p41
    %p43 = scmp.ne.s32.totalorder %s35, %s38
    %p44 = scmp.eq.s32.totalorder %s9, 0
    %p45 = por %p43, %p44
    %p46 = scmp.ne.s32.totalorder %s35, %s38
    %p47 = scmp.eq.s32.totalorder %s14, 3
    %p48 = por %p46, %p47
    %p49 = scmp.ne.s32.totalorder %s38, %s39
    %p50 = scmp.eq.s32.totalorder %s14, 0
    %p51 = por %p49, %p50
    %p52 = scmp.ne.s32.totalorder %s38, %s39
    %p53 = scmp.eq.s32.totalorder %s15, 3
    %p54 = por %p52, %p53
    %p56 = scmp.ne.s32.totalorder %s39, %s55
    %p57 = scmp.eq.s32.totalorder %s15, 0
    %p58 = por %p56, %p57
    %s59 = smul.u32 %s16, 2
    %s60 = sadd.s32 %s59, %s17
    %s61 = smul.u32 %s28, 2
    %s62 = sadd.s32 %s61, %s24
    %s63 = ssub.s32 %s60, %s62
    %p64 = scmp.eq.s32.totalorder %s63, 0
    %s66 = sadd.s32 %s65, 1
    %s67 = scalar_select %p64, %s65, %s66
    %p70 = pneg %p64
    %p71 = scmp.eq.s32.totalorder %s9, 3
    %p72 = por %p70, %p71
    %p73 = scmp.ne.s32.totalorder %s65, %s68
    %p74 = scmp.eq.s32.totalorder %s9, 0
    %p75 = por %p73, %p74
    %p76 = scmp.ne.s32.totalorder %s65, %s68
    %p77 = scmp.eq.s32.totalorder %s14, 3
    %p78 = por %p76, %p77
    %p79 = scmp.ne.s32.totalorder %s68, %s69
    %p80 = scmp.eq.s32.totalorder %s14, 0
    %p81 = por %p79, %p80
    %p82 = scmp.ne.s32.totalorder %s68, %s69
    %p83 = scmp.eq.s32.totalorder %s15, 3
    %p84 = por %p82, %p83
    %p86 = scmp.ne.s32.totalorder %s69, %s85
    %p87 = scmp.eq.s32.totalorder %s15, 0
    %p88 = por %p86, %p87
    %s89 = smul.u32 %s16, 2
    %s90 = sadd.s32 %s89, %s17
    %s91 = smul.u32 %s28, 2
    %s92 = sadd.s32 %s91, %s24
    %s93 = ssub.s32 %s90, %s92
    %p94 = scmp.eq.s32.totalorder %s93, 0
    %s96 = sadd.s32 %s95, 1
    %s97 = scalar_select %p94, %s95, %s96
    %p100 = pneg %p94
    %p101 = scmp.eq.s32.totalorder %s9, 3
    %p102 = por %p100, %p101
    %p103 = scmp.ne.s32.totalorder %s95, %s98
    %p104 = scmp.eq.s32.totalorder %s9, 0
    %p105 = por %p103, %p104
    %p106 = scmp.ne.s32.totalorder %s95, %s98
    %p107 = scmp.eq.s32.totalorder %s14, 3
    %p108 = por %p106, %p107
    %p109 = scmp.ne.s32.totalorder %s98, %s99
    %p110 = scmp.eq.s32.totalorder %s14, 0
    %p111 = por %p109, %p110
    %p112 = scmp.ne.s32.totalorder %s98, %s99
    %p113 = scmp.eq.s32.totalorder %s15, 3
    %p114 = por %p112, %p113
    %p116 = scmp.ne.s32.totalorder %s99, %s115
    %p117 = scmp.eq.s32.totalorder %s15, 0
    %p118 = por %p116, %p117
    %s119 = ssub.s32 %s16, %s28
    %p120 = scmp.eq.s32.totalorder %s119, 0
    %s122 = sadd.s32 %s121, 1
    %s123 = scalar_select %p120, %s121, %s122
    %p126 = pneg %p120
    %p127 = scmp.eq.s32.totalorder %s9, 3
    %p128 = por %p126, %p127
    %p129 = scmp.ne.s32.totalorder %s121, %s124
    %p130 = scmp.eq.s32.totalorder %s9, 0
    %p131 = por %p129, %p130
    %p132 = scmp.ne.s32.totalorder %s121, %s124
    %p133 = scmp.eq.s32.totalorder %s14, 3
    %p134 = por %p132, %p133
    %p135 = scmp.ne.s32.totalorder %s124, %s125
    %p136 = scmp.eq.s32.totalorder %s14, 0
    %p137 = por %p135, %p136
    %p138 = scmp.ne.s32.totalorder %s124, %s125
    %p139 = scmp.eq.s32.totalorder %s15, 3
    %p140 = por %p138, %p139
    %p142 = scmp.ne.s32.totalorder %s125, %s141
    %p143 = scmp.eq.s32.totalorder %s15, 0
    %p144 = por %p142, %p143
    %p145 = scmp.le.s32.totalorder 1, %s9
    %p146 = scmp.lt.s32.totalorder %s9, 5
    %p147 = pnand %p145, %p146
    %p148 = pneg %p147
    // Predicated region
    $region9: #{reward_sampler_forward.1} parent=5 // pred_check
      _
    $region10: #{reward_sampler_forward.1} parent=5 // pred_check_branch
      %150 = sbr.rel (%p147) target = $region12
    $region11: #{reward_sampler_forward.1} parent=5 // pred_region
      %s151 = ssub.s32 %s9, 1
    $region12: #{reward_sampler_forward.1} parent=5 // pred_fallthru
      _
    %p152 = scmp.lt.s32.totalorder %s9, 4
    // Predicated region
    $region13: #{reward_sampler_forward.1} parent=5 // pred_check
      %p153 = pneg %p152
    $region14: #{reward_sampler_forward.1} parent=5 // pred_check_branch
      %155 = sbr.rel (%p153) target = $region16
    $region15: #{reward_sampler_forward.1} parent=5 // pred_region
      // Predicated region
      $region17: #{reward_sampler_forward.1} parent=15 // pred_check
        %p156 = pneg %p45
      $region18: #{reward_sampler_forward.1} parent=15 // pred_check_branch
        %158 = sbr.rel (%p156) target = $region20
      $region19: #{reward_sampler_forward.1} parent=15 // pred_region
        %s159 = smul.u32 %s16, 2
        %s160 = sadd.s32 %s159, %s17
        %p161 = scmp.lt.s32.totalorder %s160, 3
        %s162 = scalar_select %p161, %s160, 3
        %s163 = smul.addr %s162, 8
        %s164 = scalar_lea.vmem %s0, %s163
        %s165 = smul.u32 %s16, 2
        %s166 = sadd.s32 %s165, %s17
      $region20: #{reward_sampler_forward.1} parent=15 // pred_fallthru
        _
      // Predicated region
      $region21: #{reward_sampler_forward.1} parent=15 // pred_check
        %p167 = pneg %p75
      $region22: #{reward_sampler_forward.1} parent=15 // pred_check_branch
        %169 = sbr.rel (%p167) target = $region24
      $region23: #{reward_sampler_forward.1} parent=15 // pred_region
        %s170 = smul.u32 %s16, 2
        %s171 = sadd.s32 %s170, %s17
        %p172 = scmp.lt.s32.totalorder %s171, 3
        %s173 = scalar_select %p172, %s171, 3
        %s174 = smul.addr %s173, 8
        %s175 = scalar_lea.vmem %s1, %s174
        %s176 = smul.u32 %s16, 2
        %s177 = sadd.s32 %s176, %s17
      $region24: #{reward_sampler_forward.1} parent=15 // pred_fallthru
        _
      // Predicated region
      $region25: #{reward_sampler_forward.1} parent=15 // pred_check
        %p178 = pneg %p105
      $region26: #{reward_sampler_forward.1} parent=15 // pred_check_branch
        %180 = sbr.rel (%p178) target = $region28
      $region27: #{reward_sampler_forward.1} parent=15 // pred_region
        %s181 = smul.u32 %s16, 2
        %s182 = sadd.s32 %s181, %s17
        %p183 = scmp.lt.s32.totalorder %s182, 3
        %s184 = scalar_select %p183, %s182, 3
        %s185 = smul.addr %s184, 8
        %s186 = scalar_lea.vmem %s2, %s185
        %s187 = smul.u32 %s16, 2
        %s188 = sadd.s32 %s187, %s17
      $region28: #{reward_sampler_forward.1} parent=15 // pred_fallthru
        _
    $region16: #{reward_sampler_forward.1} parent=5 // pred_fallthru
      _
    %p189 = scmp.le.s32.totalorder 1, %s9
    %p190 = scmp.lt.s32.totalorder %s9, 5
    %p191 = pnand %p189, %p190
    %p192 = pneg %p191
    // Predicated region
    $region29: #{reward_sampler_forward.1} parent=5 // pred_check
      _
    $region30: #{reward_sampler_forward.1} parent=5 // pred_check_branch
      %194 = sbr.rel (%p191) target = $region32
    $region31: #{reward_sampler_forward.1} parent=5 // pred_region
      %s195 = ssub.s32 %s9, 1
      %s196 = smul.u32 %s18, 2
      %s197 = sadd.s32 %s196, %s19
      %p198 = scmp.lt.s32.totalorder %s197, 3
      %s199 = scalar_select %p198, %s197, 3
      %s200 = smul.addr %s199, 8
      %s201 = scalar_lea.vmem %s0, %s200
      %p202 = pneg %p51
      %p203 = pneg %p48
      %s204 = smul.u32 %s18, 2
      %s205 = sadd.s32 %s204, %s19
      %p206 = scmp.lt.s32.totalorder %s205, 3
      %s207 = scalar_select %p206, %s205, 3
      %s208 = smul.addr %s207, 8
      %s209 = scalar_lea.vmem %s1, %s208
      %p210 = pneg %p81
      %p211 = pneg %p78
      %s212 = smul.u32 %s18, 2
      %s213 = sadd.s32 %s212, %s19
      %p214 = scmp.lt.s32.totalorder %s213, 3
      %s215 = scalar_select %p214, %s213, 3
      %s216 = smul.addr %s215, 8
      %s217 = scalar_lea.vmem %s2, %s216
      %p218 = pneg %p111
      %p219 = pneg %p108
      %p220 = pneg %p137
      %p221 = pneg %p134
      %p222 = scmp.lt.s32.totalorder %s18, 1
      %s223 = scalar_select %p222, %s18, 1
      %s224 = scalar_lea.vmem %s3, %s223
      %s225 = smul.u32 %s18, 2
      %s226 = sadd.s32 %s225, %s19
      %p227 = scmp.lt.s32.totalorder %s226, 3
      %s228 = scalar_select %p227, %s226, 3
      %s229 = smul.addr %s228, 8
      %s230 = scalar_lea.vmem %s0, %s229
      %s231 = smul.u32 %s18, 2
      %s232 = sadd.s32 %s231, %s19
      %s233 = smul.u32 %s18, 2
      %s234 = sadd.s32 %s233, %s19
      %p235 = scmp.lt.s32.totalorder %s234, 3
      %s236 = scalar_select %p235, %s234, 3
      %s237 = smul.addr %s236, 8
      %s238 = scalar_lea.vmem %s1, %s237
      %s239 = smul.u32 %s18, 2
      %s240 = sadd.s32 %s239, %s19
      %s241 = smul.u32 %s18, 2
      %s242 = sadd.s32 %s241, %s19
      %p243 = scmp.lt.s32.totalorder %s242, 3
      %s244 = scalar_select %p243, %s242, 3
      %s245 = smul.addr %s244, 8
      %s246 = scalar_lea.vmem %s2, %s245
      %s247 = smul.u32 %s18, 2
      %s248 = sadd.s32 %s247, %s19
      %p249 = scmp.lt.s32.totalorder %s18, 1
      %s250 = scalar_select %p249, %s18, 1
      %s251 = scalar_lea.vmem %s3, %s250
      %p252 = scmp.eq.s32.totalorder %s19, 0
      // Predicated region
      $region33: #{reward_sampler_forward.1} parent=31 // pred_check
        %p253 = pneg %p252
      $region34: #{reward_sampler_forward.1} parent=31 // pred_check_branch
        %255 = sbr.rel (%p253) target = $region36
      $region35: #{reward_sampler_forward.1} parent=31 // pred_region
        %vm256 = vcmask 31744
        %257 = vst.msk [vmem:[#allocation2] sm:$0xff] %vm256, 0.0
      $region36: #{reward_sampler_forward.1} parent=31 // pred_fallthru
        _
      %v258 = vld [vmem:[%s230] sm:$0xff]
      %v259 = vld [vmem:[%s246] sm:$0xff]
      %v260 = vlaneseq
      %v261 = vand.u32 %v260, 127
      %v262 = vmul.f32 %v258, 1.442695
      %v263 = vpow.pop %v262
      %v264 = vmul.f32 %v263, %v258
      %vm265 = vcmask 261120
      %v266 = vsel %vm265, %v264, 0.0
      %267 = vadd.xlane.f32.xlu0 %v266
      %v268 = vpop.xlane.xlu0 %267
      %v269 = vld [vmem:[%s238] sm:$0xff]
      %270 = vset.pattern.permute.xlu0 0
      %271 = vperm.xlu0 %270, %v269
      %v272 = vpop.permute.xlu0 %271
      %vm273 = vcmp.eq.s32.totalorder %v261, %v272
      %v274 = vsel %vm273, %v258, 0.0
      %v275 = vsel %vm265, %v274, 0.0
      %276 = vadd.xlane.f32.xlu0 %v275
      %v277 = vpop.xlane.xlu0 %276
      %v278 = vsub.f32 0.0, %v277
      %v279 = vld [vmem:[#allocation2] sm:$0xff]
      %v280 = vmul.f32 %v278, %v259
      %v281 = vadd.f32 %v279, %v280
      %vm282 = vcmask 7168
      %283 = vst.msk [vmem:[#allocation2] sm:$0xff] %vm282, %v281
      %v284 = vld [vmem:[%s238] sm:$0xff]
      %285 = vset.pattern.permute.xlu0 1
      %286 = vperm.xlu0 %285, %v284
      %v287 = vpop.permute.xlu0 %286
      %vm288 = vcmp.eq.s32.totalorder %v261, %v287
      %v289 = vsel %vm288, %v258, 0.0
      %v290 = vsel %vm265, %v289, 0.0
      %291 = vadd.xlane.f32.xlu0 %v290
      %v292 = vpop.xlane.xlu0 %291
      %v293 = vsub.f32 0.0, %v292
      %v294 = vmul.f32 %v268, 0.1
      %v295 = vadd.f32 %v293, %v294
      %v296 = vld [vmem:[#allocation2] sm:$0xff]
      %v297 = vmul.f32 %v295, %v259
      %299 = vrot.lane.b32.xlu0 %v297, 1
      %v300 = vpop.permute.xlu0 %299
      %v302 = vadd.f32 %v296, %v300
      %vm303 = vcmask 15368
      %304 = vst.msk [vmem:[#allocation2] sm:$0xff] %vm303, %v302
      %v305 = vld [vmem:[%s238] sm:$0xff]
      %306 = vset.pattern.permute.xlu0 2
      %307 = vperm.xlu0 %306, %v305
      %v308 = vpop.permute.xlu0 %307
      %vm309 = vcmp.eq.s32.totalorder %v261, %v308
      %v310 = vsel %vm309, %v258, 0.0
      %v311 = vsel %vm265, %v310, 0.0
      %312 = vadd.xlane.f32.xlu0 %v311
      %v313 = vpop.xlane.xlu0 %312
      %v314 = vsub.f32 0.0, %v313
      %v315 = vadd.f32 %v314, %v294
      %v316 = vld [vmem:[#allocation2] sm:$0xff]
      %v317 = vmul.f32 %v315, %v259
      %319 = vrot.lane.b32.xlu0 %v317, 2
      %v320 = vpop.permute.xlu0 %319
      %v322 = vadd.f32 %v316, %v320
      %vm323 = vcmask 23568
      %324 = vst.msk [vmem:[#allocation2] sm:$0xff] %vm323, %v322
      %v325 = vld [vmem:[#allocation2] sm:$0xff]
      %327 = vrot.lane.b32.xlu0 %v259, 3
      %v328 = vpop.permute.xlu0 %327
      %v330 = vadd.f32 %v325, %v328
      %vm331 = vcmask 31768
      %332 = vst.msk [vmem:[#allocation2] sm:$0xff] %vm331, %v330
      %p333 = scmp.eq.s32.totalorder %s19, 1
      // Predicated region
      $region37: #{reward_sampler_forward.1} parent=31 // pred_check
        %p334 = pneg %p333
      $region38: #{reward_sampler_forward.1} parent=31 // pred_check_branch
        %336 = sbr.rel (%p334) target = $region40
      $region39: #{reward_sampler_forward.1} parent=31 // pred_region
        %v337 = vld [vmem:[#allocation2] sm:$0xff]
        %vm338 = vcmask 31744
        %v339 = vsel %vm338, %v337, 0.0
        %v340 = vrot.slane %v339, 4
        %v341 = vadd.f32 %v339, %v340
        %v342 = vrot.slane %v341, 2
        %v343 = vadd.f32 %v341, %v342
        %v344 = vrot.slane %v343, 1
        %v345 = vadd.f32 %v343, %v344
        %vm346 = vcmask 24576
        %347 = vst.msk [vmem:[%s251] sm:$0x1] %vm346, %v345
      $region40: #{reward_sampler_forward.1} parent=31 // pred_fallthru
        _
      %p348 = scmp.lt.s32.totalorder %s18, 1
      %s349 = scalar_select %p348, %s18, 1
      %s350 = scalar_lea.vmem %s3, %s349
      // Predicated region
      $region41: #{reward_sampler_forward.1} parent=31 // pred_check
        %p351 = pneg %p134
      $region42: #{reward_sampler_forward.1} parent=31 // pred_check_branch
        %353 = sbr.rel (%p351) target = $region44
      $region43: #{reward_sampler_forward.1} parent=31 // pred_region
        _
      $region44: #{reward_sampler_forward.1} parent=31 // pred_fallthru
        _
    $region32: #{reward_sampler_forward.1} parent=5 // pred_fallthru
      _
    %p354 = scmp.le.s32.totalorder 2, %s9
    // Predicated region
    $region45: #{reward_sampler_forward.1} parent=5 // pred_check
      %p355 = pneg %p354
    $region46: #{reward_sampler_forward.1} parent=5 // pred_check_branch
      %357 = sbr.rel (%p355) target = $region48
    $region47: #{reward_sampler_forward.1} parent=5 // pred_region
      %s358 = ssub.s32 %s9, 2
      // Predicated region
      $region49: #{reward_sampler_forward.1} parent=47 // pred_check
        %p359 = pneg %p140
      $region50: #{reward_sampler_forward.1} parent=47 // pred_check_branch
        %361 = sbr.rel (%p359) target = $region52
      $region51: #{reward_sampler_forward.1} parent=47 // pred_region
        %p362 = scmp.lt.s32.totalorder %s20, 1
        %s363 = scalar_select %p362, %s20, 1
        %s364 = scalar_lea.vmem %s3, %s363
      $region52: #{reward_sampler_forward.1} parent=47 // pred_fallthru
        _
    $region48: #{reward_sampler_forward.1} parent=5 // pred_fallthru
      _
  $region6: #{reward_sampler_forward.1} parent=0 // loop_footer
    %s13 = sadd.s32 1, %s9
  $region7: #{reward_sampler_forward.1} parent=0 // loop_footer_branch
    %8 = sbr.rel target = $region3
  $region8: #{reward_sampler_forward.1} parent=0 // loop_exit
    _

</llo_original>
